<compile_context>
chip_gen: v6e
topology: v6e:2x2x1
jax: 0.10.0
libtpu: 0.0.40
codegen_flags: <defaults>
</compile_context>

<pallas_src>
from functools import partial

import numpy as np
import jax
import jax.numpy as jnp
from jax.experimental import pallas as pl
from jax.experimental.pallas import tpu as pltpu


def ea_kernel(x_ref, k_ref, shift_ref, hsum_ref, v_ref, o_ref, *,
              n_valid, n_block):
    # x_ref    : (Cin,  Nb)   f32   one batch element, channels x flattened HW
    # k_ref    : (Cmid, Cin)  bf16  1x1 "key" weights with BN scale folded in
    # shift_ref: (Cmid, 1)    f32   folded BN shift (beta - mean*scale)
    # hsum_ref : (Cmid, Cmid) bf16  block-diagonal ones: per-head channel sum
    # v_ref    : (Cout, Cmid) bf16  1x1 "value" weights
    # o_ref    : (Cout, Nb)   f32/bf16 output (NCHW, spatial flattened -> lanes)

    # --- 1x1 conv (key) + folded BatchNorm ---------------------------------
    # Cast x to bf16 in-kernel (free VPU filler) instead of a wrapper-side
    # XLA convert pass over HBM.
    x_bf = x_ref[...].astype(jnp.bfloat16)
    y = jnp.dot(k_ref[...], x_bf, preferred_element_type=jnp.float32)
    y = y + shift_ref[...]                                   # (Cmid, Nb) f32

    if n_valid != n_block:  # static Python condition (only when N was padded)
        lane = jax.lax.broadcasted_iota(jnp.int32, y.shape, 1)
        y = jnp.where(lane < n_valid, y, -jnp.inf)

    # --- _act_dn: softmax over spatial positions (lane axis, per channel) --
    m = jnp.max(y, axis=-1, keepdims=True)
    p = jnp.exp(y - m)
    z = jnp.sum(p, axis=-1, keepdims=True)
    attn_bf = (p * pl.reciprocal(z, approx=True)).astype(jnp.bfloat16)

    # --- divide by per-head channel sum, clipped at 1e-4 (bf16 MXU) --------
    s = jnp.dot(hsum_ref[...], attn_bf, preferred_element_type=jnp.float32)
    inv = pl.reciprocal(jnp.maximum(s, 1e-4), approx=True).astype(jnp.bfloat16)
    attn_bf = attn_bf * inv                                  # (Cmid, Nb) bf16

    # --- 1x1 conv (value) ---------------------------------------------------
    out = jnp.dot(v_ref[...], attn_bf, preferred_element_type=jnp.float32)
    o_ref[...] = out.astype(o_ref.dtype)


def _round_up(n, m):
    return (n + m - 1) // m * m


@partial(jax.jit, static_argnames=("num_heads", "eps", "out_dtype"))
def external_attention_forward(x_nchw, k_oihw, v_oihw, gamma, beta,
                               run_mean, run_var, num_heads=8, eps=1e-5,
                               out_dtype=jnp.float32):
    """ExternalAttention forward, use_cross_kv=False, BN in eval mode.

    x_nchw : (B, Cin, H, W) f32
    k_oihw : (Cmid, Cin, 1, 1)   v_oihw : (Cout, Cmid, 1, 1)
    Returns (B, Cout, Ho, Wo) out_dtype (Ho=H//2 if Cin!=Cout else H, same W).
    """
    B, Cin, H, W = x_nchw.shape
    Cmid = k_oihw.shape[0]
    Cout = v_oihw.shape[0]
    assert Cmid % num_heads == 0, "inter_channels must be divisible by heads"
    assert Cout % num_heads == 0, "out_channels must be divisible by heads"

    # stride-2, pad-0, 1x1 conv == spatial subsampling then 1x1 conv (exact).
    if Cin != Cout:
        # TODO(synk): skip odd rows at the DMA level (index_map over H plus a
        # strided pl.ds in-kernel) instead of this wrapper-side XLA slice.
        x_nchw = x_nchw[:, :, ::2, ::2]
    Ho, Wo = x_nchw.shape[2], x_nchw.shape[3]
    N = Ho * Wo
    Nb = _round_up(N, 128)          # keep the lane axis a multiple of 128

    # ---- glue: fold BN (eval) into k, build head-sum operator --------------
    scale = gamma / jnp.sqrt(run_var + eps)                  # (Cmid,)
    shift = (beta - run_mean * scale).reshape(Cmid, 1).astype(jnp.float32)
    k_mat = (k_oihw.reshape(Cmid, Cin) * scale[:, None]).astype(jnp.bfloat16)
    v_mat = v_oihw.reshape(Cout, Cmid).astype(jnp.bfloat16)

    head_id = jnp.arange(Cmid, dtype=jnp.int32) // (Cmid // num_heads)
    hsum = (head_id[:, None] == head_id[None, :]).astype(jnp.bfloat16)

    x2d = x_nchw.reshape(B, Cin, N)            # stays f32 -> cast in-kernel
    if Nb != N:
        x2d = jnp.pad(x2d, ((0, 0), (0, 0), (0, Nb - N)))

    out_dtype = np.dtype(out_dtype)
    # Scoped-VMEM budget: double-buffered x/out blocks + live (Cmid, Nb)
    # temporaries (y, p, attn_f32, s/inv, attn_bf16) + weights headroom.
    vmem_bytes = (2 * Cin * Nb * 4
                  + 2 * Cout * Nb * out_dtype.itemsize
                  + 6 * Cmid * Nb * 4
                  + (4 << 20))
    vmem_bytes = int(max(16 << 20, min(vmem_bytes, 100 << 20)))

    kernel = partial(ea_kernel, n_valid=N, n_block=Nb)

    out2d = pl.pallas_call(
        kernel,
        out_shape=jax.ShapeDtypeStruct((B, Cout, Nb), out_dtype),
        grid_spec=pltpu.PrefetchScalarGridSpec(
            num_scalar_prefetch=0,
            grid=(B,),
            in_specs=[
                pl.BlockSpec((None, Cin, Nb), lambda b: (b, 0, 0)),   # x (f32)
                pl.BlockSpec((Cmid, Cin), lambda b: (0, 0)),          # k folded
                pl.BlockSpec((Cmid, 1), lambda b: (0, 0)),            # BN shift
                pl.BlockSpec((Cmid, Cmid), lambda b: (0, 0)),         # head sum
                pl.BlockSpec((Cout, Cmid), lambda b: (0, 0)),         # v
            ],
            out_specs=pl.BlockSpec((None, Cout, Nb), lambda b: (b, 0, 0)),
        ),
        compiler_params=pltpu.CompilerParams(
            dimension_semantics=("parallel",),
            vmem_limit_bytes=vmem_bytes),
    )(x2d, k_mat, shift, hsum, v_mat)

    if Nb != N:
        out2d = out2d[:, :, :N]
    return out2d.reshape(B, Cout, Ho, Wo)                    # free view


def _reference(x, k, v, gamma, beta, run_mean, run_var, num_heads, eps=1e-5):
    """Plain-JAX f32 reference matching the PyTorch module (eval-mode BN)."""
    Cin, Cout = x.shape[1], v.shape[0]
    stride = 1 if Cin == Cout else 2
    y = jax.lax.conv_general_dilated(
        x, k, window_strides=(stride, stride), padding="VALID",
        dimension_numbers=("NCHW", "OIHW", "NCHW"))
    scale = gamma / jnp.sqrt(run_var + eps)
    shift = beta - run_mean * scale
    y = y * scale[None, :, None, None] + shift[None, :, None, None]
    B, C, h, w = y.shape
    t = y.reshape(B, num_heads, C // num_heads, h * w)
    t = jax.nn.softmax(t, axis=3)
    t = t / jnp.maximum(jnp.sum(t, axis=2, keepdims=True), 1e-4)
    t = t.reshape(B, C, h, w)
    out = jax.lax.conv_general_dilated(
        t, v, window_strides=(1, 1), padding="VALID",
        dimension_numbers=("NCHW", "OIHW", "NCHW"))
    return out


if __name__ == "__main__":
    # Small shapes consistent with ExternalAttention(in_channels=32,
    # out_channels=32, inter_channels=64, num_heads=8) on a (2,32,16,16) input
    # (same in/out channels -> stride 1 path, use_cross_kv=False).
    B, Cin, H, W = 2, 32, 16, 16
    Cmid, Cout, num_heads = 64, 32, 8

    key = jax.random.PRNGKey(0)
    ks = jax.random.split(key, 7)
    x = jax.random.normal(ks[0], (B, Cin, H, W), jnp.float32)
    k_w = 0.2 * jax.random.normal(ks[1], (Cmid, Cin, 1, 1), jnp.float32)
    v_w = 0.2 * jax.random.normal(ks[2], (Cout, Cmid, 1, 1), jnp.float32)
    gamma = 1.0 + 0.1 * jax.random.normal(ks[3], (Cmid,), jnp.float32)
    beta = 0.1 * jax.random.normal(ks[4], (Cmid,), jnp.float32)
    run_mean = 0.1 * jax.random.normal(ks[5], (Cmid,), jnp.float32)
    run_var = 0.5 + jnp.abs(jax.random.normal(ks[6], (Cmid,), jnp.float32))

    out = external_attention_forward(x, k_w, v_w, gamma, beta, run_mean,
                                     run_var, num_heads=num_heads)
    out = jax.block_until_ready(out)

    ref = _reference(x, k_w, v_w, gamma, beta, run_mean, run_var, num_heads)
    assert out.shape == (B, Cout, H, W)
    # bf16 MXU inputs / bf16 head-sum matmul with f32 accumulation ->
    # ~1e-2-level agreement vs the f32 reference.
    assert jnp.allclose(out, ref, rtol=3e-2, atol=3e-2), "mismatch vs reference"

    print("KERNEL_OK")
</pallas_src>

<mosaic_0001>
module attributes {stable_mosaic.version = 11 : i64} {
  func.func @ea_kernel(%arg0: i32, %arg1: memref<1x32x256xf32, #tpu.memory_space<vmem>>, %arg2: memref<64x32xbf16, #tpu.memory_space<vmem>>, %arg3: memref<64x1xf32, #tpu.memory_space<vmem>>, %arg4: memref<64x64xbf16, #tpu.memory_space<vmem>>, %arg5: memref<32x64xbf16, #tpu.memory_space<vmem>>, %arg6: memref<1x32x256xf32, #tpu.memory_space<vmem>>) attributes {dimension_semantics = [#tpu.dimension_semantics<parallel>], iteration_bounds = array<i64: 2>, scalar_prefetch = 0 : i64, scratch_operands = 0 : i64, tpu.core_type = #tpu.core_type<tc>, window_params = [{transform_indices = @transform_0, window_bounds = array<i64: 1, 32, 256>}, {pipeline_mode = #tpu.pipeline_mode<synchronous>, transform_indices = @transform_1, window_bounds = array<i64: 64, 32>}, {pipeline_mode = #tpu.pipeline_mode<synchronous>, transform_indices = @transform_2, window_bounds = array<i64: 64, 1>}, {pipeline_mode = #tpu.pipeline_mode<synchronous>, transform_indices = @transform_3, window_bounds = array<i64: 64, 64>}, {pipeline_mode = #tpu.pipeline_mode<synchronous>, transform_indices = @transform_4, window_bounds = array<i64: 32, 64>}, {transform_indices = @transform_5, window_bounds = array<i64: 1, 32, 256>}]} {
    %c0 = arith.constant 0 : index
    %c0_0 = arith.constant 0 : index
    %c0_1 = arith.constant 0 : index
    %0 = vector.load %arg1[%c0, %c0_0, %c0_1] : memref<1x32x256xf32, #tpu.memory_space<vmem>>, vector<1x32x256xf32>
    %1 = vector.shape_cast %0 : vector<1x32x256xf32> to vector<32x256xf32>
    %2 = arith.truncf %1 : vector<32x256xf32> to vector<32x256xbf16>
    %c0_2 = arith.constant 0 : index
    %c0_3 = arith.constant 0 : index
    %3 = vector.load %arg2[%c0_2, %c0_3] : memref<64x32xbf16, #tpu.memory_space<vmem>>, vector<64x32xbf16>
    %cst = arith.constant dense<0.000000e+00> : vector<64x256xf32>
    %4 = tpu.matmul %3, %2, %cst {dimension_numbers = #tpu.dot_dimension_numbers<[1], [0], [0], [1], [0, 0, 1, 1], [], []>} : vector<64x32xbf16>, vector<32x256xbf16>, vector<64x256xf32> -> vector<64x256xf32>
    %c0_4 = arith.constant 0 : index
    %c0_5 = arith.constant 0 : index
    %5 = vector.load %arg3[%c0_4, %c0_5] : memref<64x1xf32, #tpu.memory_space<vmem>>, vector<64x1xf32>
    %6 = vector.broadcast %5 : vector<64x1xf32> to vector<64x256xf32>
    %7 = arith.addf %4, %6 : vector<64x256xf32>
    %cst_6 = arith.constant dense<0xFF800000> : vector<64xf32>
    %8 = vector.multi_reduction <maximumf>, %7, %cst_6 [1] : vector<64x256xf32> to vector<64xf32>
    %9 = vector.shape_cast %8 : vector<64xf32> to vector<64x1xf32>
    %10 = vector.broadcast %9 : vector<64x1xf32> to vector<64x256xf32>
    %11 = arith.subf %7, %10 : vector<64x256xf32>
    %12 = math.exp %11 : vector<64x256xf32>
    %cst_7 = arith.constant dense<0.000000e+00> : vector<64xf32>
    %13 = vector.multi_reduction <add>, %12, %cst_7 [1] : vector<64x256xf32> to vector<64xf32>
    %14 = vector.shape_cast %13 : vector<64xf32> to vector<64x1xf32>
    %15 = tpu.reciprocal %14 {approx = true} : vector<64x1xf32> -> vector<64x1xf32>
    %16 = vector.broadcast %15 : vector<64x1xf32> to vector<64x256xf32>
    %17 = arith.mulf %12, %16 : vector<64x256xf32>
    %18 = arith.truncf %17 : vector<64x256xf32> to vector<64x256xbf16>
    %c0_8 = arith.constant 0 : index
    %c0_9 = arith.constant 0 : index
    %19 = vector.load %arg4[%c0_8, %c0_9] : memref<64x64xbf16, #tpu.memory_space<vmem>>, vector<64x64xbf16>
    %cst_10 = arith.constant dense<0.000000e+00> : vector<64x256xf32>
    %20 = tpu.matmul %19, %18, %cst_10 {dimension_numbers = #tpu.dot_dimension_numbers<[1], [0], [0], [1], [0, 0, 1, 1], [], []>} : vector<64x64xbf16>, vector<64x256xbf16>, vector<64x256xf32> -> vector<64x256xf32>
    %cst_11 = arith.constant 9.99999974E-5 : f32
    %21 = vector.broadcast %cst_11 : f32 to vector<64x256xf32>
    %22 = arith.maximumf %20, %21 : vector<64x256xf32>
    %23 = tpu.reciprocal %22 {approx = true} : vector<64x256xf32> -> vector<64x256xf32>
    %24 = arith.truncf %23 : vector<64x256xf32> to vector<64x256xbf16>
    %25 = arith.mulf %18, %24 : vector<64x256xbf16>
    %c0_12 = arith.constant 0 : index
    %c0_13 = arith.constant 0 : index
    %26 = vector.load %arg5[%c0_12, %c0_13] : memref<32x64xbf16, #tpu.memory_space<vmem>>, vector<32x64xbf16>
    %cst_14 = arith.constant dense<0.000000e+00> : vector<32x256xf32>
    %27 = tpu.matmul %26, %25, %cst_14 {dimension_numbers = #tpu.dot_dimension_numbers<[1], [0], [0], [1], [0, 0, 1, 1], [], []>} : vector<32x64xbf16>, vector<64x256xbf16>, vector<32x256xf32> -> vector<32x256xf32>
    %c0_15 = arith.constant 0 : index
    %c0_16 = arith.constant 0 : index
    %c0_17 = arith.constant 0 : index
    %28 = vector.load %arg6[%c0_15, %c0_16, %c0_17] : memref<1x32x256xf32, #tpu.memory_space<vmem>>, vector<1x32x256xf32>
    %29 = vector.shape_cast %28 : vector<1x32x256xf32> to vector<32x256xf32>
    %30 = vector.shape_cast %27 : vector<32x256xf32> to vector<1x32x256xf32>
    tpu.vector_store %arg6[%c0_15, %c0_16, %c0_17], %30 {strides = array<i32>} : memref<1x32x256xf32, #tpu.memory_space<vmem>>, vector<1x32x256xf32>,
    return
  }
  func.func @transform_0(%arg0: i32) -> (i32, i32, i32) {
    %c0_i32 = arith.constant 0 : i32
    %c0_i32_0 = arith.constant 0 : i32
    %c0_i32_1 = arith.constant 0 : i32
    return %arg0, %c0_i32, %c0_i32_0 : i32, i32, i32
  }
  func.func @transform_1(%arg0: i32) -> (i32, i32) {
    %c0_i32 = arith.constant 0 : i32
    %c0_i32_0 = arith.constant 0 : i32
    %c0_i32_1 = arith.constant 0 : i32
    return %c0_i32, %c0_i32_0 : i32, i32
  }
  func.func @transform_2(%arg0: i32) -> (i32, i32) {
    %c0_i32 = arith.constant 0 : i32
    %c0_i32_0 = arith.constant 0 : i32
    %c0_i32_1 = arith.constant 0 : i32
    return %c0_i32, %c0_i32_0 : i32, i32
  }
  func.func @transform_3(%arg0: i32) -> (i32, i32) {
    %c0_i32 = arith.constant 0 : i32
    %c0_i32_0 = arith.constant 0 : i32
    %c0_i32_1 = arith.constant 0 : i32
    return %c0_i32, %c0_i32_0 : i32, i32
  }
  func.func @transform_4(%arg0: i32) -> (i32, i32) {
    %c0_i32 = arith.constant 0 : i32
    %c0_i32_0 = arith.constant 0 : i32
    %c0_i32_1 = arith.constant 0 : i32
    return %c0_i32, %c0_i32_0 : i32, i32
  }
  func.func @transform_5(%arg0: i32) -> (i32, i32, i32) {
    %c0_i32 = arith.constant 0 : i32
    %c0_i32_0 = arith.constant 0 : i32
    %c0_i32_1 = arith.constant 0 : i32
    return %arg0, %c0_i32, %c0_i32_0 : i32, i32, i32
  }
}

</mosaic_0001>

<llo_original>
// kernel: external_attention_forward.1
$region0: #{external_attention_forward.1}
  #allocation0 [shape = 'u32[]', space=smem, size = 0x4, offset = 0x4, fixed_abs, tag = 'smem constant byte address 0x4 - core index']
  #allocation1 [shape = 'u32[144,128]{1,0:T(1,128)}', space=vmem, size = 0x12000, scoped, tag = 'internal scratch']
  %s0 = inlined_call_operand.vmem [shape: f32[2,32,256], index: 0, kind: input, shape index: {}]
  %s1 = inlined_call_operand.vmem [shape: bf16[64,32], index: 1, kind: input, shape index: {}]
  %s2 = inlined_call_operand.vmem [shape: f32[64,1], index: 2, kind: input, shape index: {}]
  %s3 = inlined_call_operand.vmem [shape: bf16[64,64], index: 3, kind: input, shape index: {}]
  %s4 = inlined_call_operand.vmem [shape: bf16[32,64], index: 4, kind: input, shape index: {}]
  %s5 = inlined_call_operand.vmem [shape: f32[2,32,256], index: 5, kind: output, shape index: {}]
  %s6 = sld [smem:[#allocation0]]
  $region53: #{external_attention_forward.1} parent=0
    _
  %s8 = ssub.s32 1, %s6
  %s9 = scalar_select 0, %s8, %s6
  loop: start=0, step=1, limit=4
  $region2: #{external_attention_forward.1} parent=0 // loop_pre_header
    _
  $region3: #{external_attention_forward.1} parent=0 // loop_header
    %s11 = sphi 0, %s15
    %p12 = scmp.ge.s32.totalorder %s11, 4
    %s21 = sphi 0, %s23
    %s24 = sphi 0, %s21
    %s25 = sphi 0, %s24
    %s41 = sphi 0, %s25
    %s45 = sphi 0, %s45
    %s47 = sphi 0, %s45
    %s48 = sphi 0, %s47
    %s62 = sphi 0, %s48
    %s66 = sphi 0, %s66
    %s68 = sphi 0, %s66
    %s69 = sphi 0, %s68
    %s83 = sphi 0, %s69
    %s87 = sphi 0, %s87
    %s89 = sphi 0, %s87
    %s90 = sphi 0, %s89
    %s104 = sphi 0, %s90
    %s108 = sphi 0, %s108
    %s110 = sphi 0, %s108
    %s111 = sphi 0, %s110
    %s125 = sphi 0, %s111
    %s131 = sphi 0, %s133
    %s134 = sphi 0, %s131
    %s135 = sphi 0, %s134
    %s151 = sphi 0, %s135
  $region4: #{external_attention_forward.1} parent=0 // loop_header_branch
    %14 = sbr.rel (%p12) target = $region8
  $region5: #{external_attention_forward.1} parent=0 // loop_body
    %s16 = ssub.s32 %s11, 1
    %s17 = ssub.s32 %s11, 2
    %s18 = sadd.s32 %s11, 1
    %s19 = ssub.s32 %s11, %s18
    %p20 = scmp.eq.s32.totalorder %s19, 0
    %s22 = sadd.s32 %s21, 1
    %s23 = scalar_select %p20, %s21, %s22
    %p26 = pneg %p20
    %p27 = scmp.eq.s32.totalorder %s11, 1
    %p28 = por %p26, %p27
    %p29 = scmp.ne.s32.totalorder %s21, %s24
    %p30 = scmp.eq.s32.totalorder %s11, 0
    %p31 = por %p29, %p30
    %p32 = scmp.ne.s32.totalorder %s21, %s24
    %p33 = scmp.eq.s32.totalorder %s16, 1
    %p34 = por %p32, %p33
    %p35 = scmp.ne.s32.totalorder %s24, %s25
    %p36 = scmp.eq.s32.totalorder %s16, 0
    %p37 = por %p35, %p36
    %p38 = scmp.ne.s32.totalorder %s24, %s25
    %p39 = scmp.eq.s32.totalorder %s17, 1
    %p40 = por %p38, %p39
    %p42 = scmp.ne.s32.totalorder %s25, %s41
    %p43 = scmp.eq.s32.totalorder %s17, 0
    %p44 = por %p42, %p43
    %s46 = sadd.s32 %s45, 1
    %p49 = scmp.eq.s32.totalorder %s11, 1
    %p50 = scmp.ne.s32.totalorder %s45, %s47
    %p51 = scmp.eq.s32.totalorder %s11, 0
    %p52 = por %p50, %p51
    %p53 = scmp.ne.s32.totalorder %s45, %s47
    %p54 = scmp.eq.s32.totalorder %s16, 1
    %p55 = por %p53, %p54
    %p56 = scmp.ne.s32.totalorder %s47, %s48
    %p57 = scmp.eq.s32.totalorder %s16, 0
    %p58 = por %p56, %p57
    %p59 = scmp.ne.s32.totalorder %s47, %s48
    %p60 = scmp.eq.s32.totalorder %s17, 1
    %p61 = por %p59, %p60
    %p63 = scmp.ne.s32.totalorder %s48, %s62
    %p64 = scmp.eq.s32.totalorder %s17, 0
    %p65 = por %p63, %p64
    %s67 = sadd.s32 %s66, 1
    %p70 = scmp.eq.s32.totalorder %s11, 1
    %p71 = scmp.ne.s32.totalorder %s66, %s68
    %p72 = scmp.eq.s32.totalorder %s11, 0
    %p73 = por %p71, %p72
    %p74 = scmp.ne.s32.totalorder %s66, %s68
    %p75 = scmp.eq.s32.totalorder %s16, 1
    %p76 = por %p74, %p75
    %p77 = scmp.ne.s32.totalorder %s68, %s69
    %p78 = scmp.eq.s32.totalorder %s16, 0
    %p79 = por %p77, %p78
    %p80 = scmp.ne.s32.totalorder %s68, %s69
    %p81 = scmp.eq.s32.totalorder %s17, 1
    %p82 = por %p80, %p81
    %p84 = scmp.ne.s32.totalorder %s69, %s83
    %p85 = scmp.eq.s32.totalorder %s17, 0
    %p86 = por %p84, %p85
    %s88 = sadd.s32 %s87, 1
    %p91 = scmp.eq.s32.totalorder %s11, 1
    %p92 = scmp.ne.s32.totalorder %s87, %s89
    %p93 = scmp.eq.s32.totalorder %s11, 0
    %p94 = por %p92, %p93
    %p95 = scmp.ne.s32.totalorder %s87, %s89
    %p96 = scmp.eq.s32.totalorder %s16, 1
    %p97 = por %p95, %p96
    %p98 = scmp.ne.s32.totalorder %s89, %s90
    %p99 = scmp.eq.s32.totalorder %s16, 0
    %p100 = por %p98, %p99
    %p101 = scmp.ne.s32.totalorder %s89, %s90
    %p102 = scmp.eq.s32.totalorder %s17, 1
    %p103 = por %p101, %p102
    %p105 = scmp.ne.s32.totalorder %s90, %s104
    %p106 = scmp.eq.s32.totalorder %s17, 0
    %p107 = por %p105, %p106
    %s109 = sadd.s32 %s108, 1
    %p112 = scmp.eq.s32.totalorder %s11, 1
    %p113 = scmp.ne.s32.totalorder %s108, %s110
    %p114 = scmp.eq.s32.totalorder %s11, 0
    %p115 = por %p113, %p114
    %p116 = scmp.ne.s32.totalorder %s108, %s110
    %p117 = scmp.eq.s32.totalorder %s16, 1
    %p118 = por %p116, %p117
    %p119 = scmp.ne.s32.totalorder %s110, %s111
    %p120 = scmp.eq.s32.totalorder %s16, 0
    %p121 = por %p119, %p120
    %p122 = scmp.ne.s32.totalorder %s110, %s111
    %p123 = scmp.eq.s32.totalorder %s17, 1
    %p124 = por %p122, %p123
    %p126 = scmp.ne.s32.totalorder %s111, %s125
    %p127 = scmp.eq.s32.totalorder %s17, 0
    %p128 = por %p126, %p127
    %s129 = ssub.s32 %s11, %s18
    %p130 = scmp.eq.s32.totalorder %s129, 0
    %s132 = sadd.s32 %s131, 1
    %s133 = scalar_select %p130, %s131, %s132
    %p136 = pneg %p130
    %p137 = scmp.eq.s32.totalorder %s11, 1
    %p138 = por %p136, %p137
    %p139 = scmp.ne.s32.totalorder %s131, %s134
    %p140 = scmp.eq.s32.totalorder %s11, 0
    %p141 = por %p139, %p140
    %p142 = scmp.ne.s32.totalorder %s131, %s134
    %p143 = scmp.eq.s32.totalorder %s16, 1
    %p144 = por %p142, %p143
    %p145 = scmp.ne.s32.totalorder %s134, %s135
    %p146 = scmp.eq.s32.totalorder %s16, 0
    %p147 = por %p145, %p146
    %p148 = scmp.ne.s32.totalorder %s134, %s135
    %p149 = scmp.eq.s32.totalorder %s17, 1
    %p150 = por %p148, %p149
    %p152 = scmp.ne.s32.totalorder %s135, %s151
    %p153 = scmp.eq.s32.totalorder %s17, 0
    %p154 = por %p152, %p153
    %p155 = scmp.le.s32.totalorder 1, %s11
    %p156 = scmp.lt.s32.totalorder %s11, 3
    %p157 = pnand %p155, %p156
    %p158 = pneg %p157
    // Predicated region
    $region9: #{external_attention_forward.1} parent=5 // pred_check
      _
    $region10: #{external_attention_forward.1} parent=5 // pred_check_branch
      %160 = sbr.rel (%p157) target = $region12
    $region11: #{external_attention_forward.1} parent=5 // pred_region
      %s161 = ssub.s32 %s11, 1
      // Predicated region
      $region13: #{external_attention_forward.1} parent=11 // pred_check
        %p162 = pneg %p58
      $region14: #{external_attention_forward.1} parent=11 // pred_check_branch
        %164 = sbr.rel (%p162) target = $region16
      $region15: #{external_attention_forward.1} parent=11 // pred_region
        _
      $region16: #{external_attention_forward.1} parent=11 // pred_fallthru
        _
      // Predicated region
      $region17: #{external_attention_forward.1} parent=11 // pred_check
        %p165 = pneg %p79
      $region18: #{external_attention_forward.1} parent=11 // pred_check_branch
        %167 = sbr.rel (%p165) target = $region20
      $region19: #{external_attention_forward.1} parent=11 // pred_region
        _
      $region20: #{external_attention_forward.1} parent=11 // pred_fallthru
        _
      // Predicated region
      $region21: #{external_attention_forward.1} parent=11 // pred_check
        %p168 = pneg %p100
      $region22: #{external_attention_forward.1} parent=11 // pred_check_branch
        %170 = sbr.rel (%p168) target = $region24
      $region23: #{external_attention_forward.1} parent=11 // pred_region
        _
      $region24: #{external_attention_forward.1} parent=11 // pred_fallthru
        _
      // Predicated region
      $region25: #{external_attention_forward.1} parent=11 // pred_check
        %p171 = pneg %p121
      $region26: #{external_attention_forward.1} parent=11 // pred_check_branch
        %173 = sbr.rel (%p171) target = $region28
      $region27: #{external_attention_forward.1} parent=11 // pred_region
        _
      $region28: #{external_attention_forward.1} parent=11 // pred_fallthru
        _
    $region12: #{external_attention_forward.1} parent=5 // pred_fallthru
      _
    %p174 = scmp.lt.s32.totalorder %s11, 2
    // Predicated region
    $region29: #{external_attention_forward.1} parent=5 // pred_check
      %p175 = pneg %p174
    $region30: #{external_attention_forward.1} parent=5 // pred_check_branch
      %177 = sbr.rel (%p175) target = $region32
    $region31: #{external_attention_forward.1} parent=5 // pred_region
      // Predicated region
      $region33: #{external_attention_forward.1} parent=31 // pred_check
        %p178 = pneg %p31
      $region34: #{external_attention_forward.1} parent=31 // pred_check_branch
        %180 = sbr.rel (%p178) target = $region36
      $region35: #{external_attention_forward.1} parent=31 // pred_region
        %p181 = scmp.lt.s32.totalorder %s11, 1
        %s182 = scalar_select %p181, %s11, 1
        %s183 = smul.addr %s182, 8
        %s184 = smul.addr %s183, 8
        %s185 = scalar_lea.vmem %s0, %s184
      $region36: #{external_attention_forward.1} parent=31 // pred_fallthru
        _
    $region32: #{external_attention_forward.1} parent=5 // pred_fallthru
      _
    %p186 = scmp.le.s32.totalorder 1, %s11
    %p187 = scmp.lt.s32.totalorder %s11, 3
    %p188 = pnand %p186, %p187
    %p189 = pneg %p188
    // Predicated region
    $region37: #{external_attention_forward.1} parent=5 // pred_check
      _
    $region38: #{external_attention_forward.1} parent=5 // pred_check_branch
      %191 = sbr.rel (%p188) target = $region40
    $region39: #{external_attention_forward.1} parent=5 // pred_region
      %s192 = ssub.s32 %s11, 1
      %p193 = scmp.lt.s32.totalorder %s16, 1
      %s194 = scalar_select %p193, %s16, 1
      %s195 = smul.addr %s194, 8
      %s196 = smul.addr %s195, 8
      %s197 = scalar_lea.vmem %s0, %s196
      %p198 = pneg %p37
      %p199 = pneg %p34
      %p200 = pneg %p58
      %p201 = pneg %p55
      %p202 = pneg %p79
      %p203 = pneg %p76
      %p204 = pneg %p100
      %p205 = pneg %p97
      %p206 = pneg %p121
      %p207 = pneg %p118
      %p208 = pneg %p147
      %p209 = pneg %p144
      %p210 = scmp.lt.s32.totalorder %s16, 1
      %s211 = scalar_select %p210, %s16, 1
      %s212 = smul.addr %s211, 8
      %s213 = smul.addr %s212, 8
      %s214 = scalar_lea.vmem %s5, %s213
      %p215 = scmp.lt.s32.totalorder %s16, 1
      %s216 = scalar_select %p215, %s16, 1
      %s217 = smul.addr %s216, 8
      %s218 = smul.addr %s217, 8
      %s219 = scalar_lea.vmem %s0, %s218
      %p220 = scmp.lt.s32.totalorder %s16, 1
      %s221 = scalar_select %p220, %s16, 1
      %s222 = smul.addr %s221, 8
      %s223 = smul.addr %s222, 8
      %s224 = scalar_lea.vmem %s5, %s223
      %v226 = vld [vmem:[%s219] sm:$0xff]
      %v227 = vld [vmem:[%s219 + $0x8] sm:$0xff]
      %v228 = vld [vmem:[%s219 + $0x10] sm:$0xff]
      %v229 = vld [vmem:[%s219 + $0x18] sm:$0xff]
      %v230 = vld [vmem:[%s219 + $0x20] sm:$0xff]
      %v231 = vld [vmem:[%s219 + $0x28] sm:$0xff]
      %v232 = vld [vmem:[%s219 + $0x30] sm:$0xff]
      %v233 = vld [vmem:[%s219 + $0x38] sm:$0xff]
      %v234 = vpack.c.bf16 %v228, %v226
      %v235 = vpack.c.bf16 %v229, %v227
      %v236 = vpack.c.bf16 %v232, %v230
      %v237 = vpack.c.bf16 %v233, %v231
      %v238 = vld [vmem:[%s1] sm:$0xf]
      %v239 = vld [vmem:[%s1 + $0x4] sm:$0xf]
      %v240 = vld [vmem:[%s1 + $0x8] sm:$0xf]
      %v241 = vld [vmem:[%s1 + $0xc] sm:$0xf]
      %v242 = vld [vmem:[%s1 + $0x10] sm:$0xf]
      %v243 = vld [vmem:[%s1 + $0x14] sm:$0xf]
      %v244 = vld [vmem:[%s1 + $0x18] sm:$0xf]
      %v245 = vld [vmem:[%s1 + $0x1c] sm:$0xf]
      %v246 = vld [vmem:[%s2] sm:$0xff]
      %v247 = vld [vmem:[%s2 + $0x8] sm:$0xff]
      %v248 = vld [vmem:[%s2 + $0x10] sm:$0xff]
      %v249 = vld [vmem:[%s2 + $0x18] sm:$0xff]
      %v250 = vld [vmem:[%s2 + $0x20] sm:$0xff]
      %v251 = vld [vmem:[%s2 + $0x28] sm:$0xff]
      %v252 = vld [vmem:[%s2 + $0x30] sm:$0xff]
      %v253 = vld [vmem:[%s2 + $0x38] sm:$0xff]
      %255 = vset.pattern.permute.xlu0 0
      %256 = vperm.xlu0 %255, %v246
      %v257 = vpop.permute.xlu0 %256
      %260 = vset.pattern.permute.xlu0 0
      %261 = vperm.xlu0 %260, %v247
      %v262 = vpop.permute.xlu0 %261
      %265 = vset.pattern.permute.xlu0 0
      %266 = vperm.xlu0 %265, %v248
      %v267 = vpop.permute.xlu0 %266
      %270 = vset.pattern.permute.xlu0 0
      %271 = vperm.xlu0 %270, %v249
      %v272 = vpop.permute.xlu0 %271
      %275 = vset.pattern.permute.xlu0 0
      %276 = vperm.xlu0 %275, %v250
      %v277 = vpop.permute.xlu0 %276
      %280 = vset.pattern.permute.xlu0 0
      %281 = vperm.xlu0 %280, %v251
      %v282 = vpop.permute.xlu0 %281
      %285 = vset.pattern.permute.xlu0 0
      %286 = vperm.xlu0 %285, %v252
      %v287 = vpop.permute.xlu0 %286
      %290 = vset.pattern.permute.xlu0 0
      %291 = vperm.xlu0 %290, %v253
      %v292 = vpop.permute.xlu0 %291
      %v302 = vunpack.c.l.b16 %v238
      %v303 = vunpack.c.l.b16 %v239
      %v304 = vunpack.c.l.b16 %v240
      %v305 = vunpack.c.l.b16 %v241
      %v306 = vunpack.c.l.b16 %v242
      %v307 = vunpack.c.l.b16 %v243
      %v308 = vunpack.c.l.b16 %v244
      %v309 = vunpack.c.l.b16 %v245
      %v310 = vpack.c.b16 %v303, %v302
      %v311 = vpack.c.b16 %v305, %v304
      %v312 = vpack.c.b16 %v307, %v306
      %v313 = vpack.c.b16 %v309, %v308
      %vm314 = vcmask 261120
      %v316 = vsel %vm314, %v310, 0
      %v319 = vsel %vm314, %v311, 0
      %v322 = vsel %vm314, %v312, 0
      %v325 = vsel %vm314, %v313, 0
      %327 = vmatprep.subr.bf16.mxu0 0
      %328 = vmatpush1.bf16.msra.mxu0 0
      %329 = vmatprep.subr.bf16.mxu0 0
      %330 = vmatpush1.bf16.msra.mxu0 0
      %331 = vmatprep.subr.bf16.mxu0 0
      %332 = vmatpush1.bf16.msra.mxu0 0
      %333 = vmatprep.subr.bf16.mxu0 0
      %334 = vmatpush1.bf16.msra.mxu0 0
      %335 = vmatprep.subr.bf16.mxu0 0
      %336 = vmatpush1.bf16.msra.mxu0 0
      %337 = vmatprep.subr.bf16.mxu0 0
      %338 = vmatpush1.bf16.msra.mxu0 0
      %339 = vmatprep.subr.bf16.mxu0 %v237
      %340 = vmatpush1.bf16.msra.mxu0 %v236
      %341 = vmatprep.subr.bf16.mxu0 %v235
      %342 = vmatpush1.bf16.msra.mxu0 %v234
      %343 = vmatprep.subr.bf16.mxu0 0
      %344 = vmatpush2.bf16.msra.mxu0 0
      %345 = vmatprep.subr.bf16.mxu0 0
      %346 = vmatpush2.bf16.msra.mxu0 0
      %347 = vmatprep.subr.bf16.mxu0 0
      %348 = vmatpush2.bf16.msra.mxu0 0
      %349 = vmatprep.subr.bf16.mxu0 0
      %350 = vmatpush2.bf16.msra.mxu0 0
      %351 = vmatprep.subr.bf16.mxu0 0
      %352 = vmatpush2.bf16.msra.mxu0 0
      %353 = vmatprep.subr.bf16.mxu0 0
      %354 = vmatpush2.bf16.msra.mxu0 0
      %355 = vmatprep.subr.bf16.mxu0 0
      %356 = vmatpush2.bf16.msra.mxu0 0
      %357 = vmatprep.subr.bf16.mxu0 0
      %358 = vmatpush2.bf16.msra.mxu0 0
      %359 = vmatprep.mubr.bf16.mxu0 0
      %360 = vmatmul.mubr.bf16.gmra.mxu0 %v316
      %v361 = vpop.f32.mrf.mxu0
      %v362 = vadd.f32 %v257, %v361
      %v363 = vpop.f32.mrf.mxu0
      %v364 = vadd.f32 %v257, %v363
      %v365 = vpop.f32.mrf.mxu0
      %v366 = vadd.f32 %v262, %v365
      %v367 = vpop.f32.mrf.mxu0
      %v368 = vadd.f32 %v262, %v367
      %369 = vmatprep.mubr.bf16.mxu0 0
      %370 = vmatmul.mubr.bf16.gmra.mxu0 %v319
      %v371 = vpop.f32.mrf.mxu0
      %v372 = vadd.f32 %v267, %v371
      %v373 = vpop.f32.mrf.mxu0
      %v374 = vadd.f32 %v267, %v373
      %v375 = vpop.f32.mrf.mxu0
      %v376 = vadd.f32 %v272, %v375
      %v377 = vpop.f32.mrf.mxu0
      %v378 = vadd.f32 %v272, %v377
      %379 = vmatprep.mubr.bf16.mxu0 0
      %380 = vmatmul.mubr.bf16.gmra.mxu0 %v322
      %v381 = vpop.f32.mrf.mxu0
      %v382 = vadd.f32 %v277, %v381
      %v383 = vpop.f32.mrf.mxu0
      %v384 = vadd.f32 %v277, %v383
      %v385 = vpop.f32.mrf.mxu0
      %v386 = vadd.f32 %v282, %v385
      %v387 = vpop.f32.mrf.mxu0
      %v388 = vadd.f32 %v282, %v387
      %389 = vmatprep.mubr.bf16.mxu0 0
      %390 = vmatmul.mubr.bf16.gmra.mxu0 %v325
      %v391 = vpop.f32.mrf.mxu0
      %v392 = vadd.f32 %v287, %v391
      %v393 = vpop.f32.mrf.mxu0
      %v394 = vadd.f32 %v287, %v393
      %v395 = vpop.f32.mrf.mxu0
      %v396 = vadd.f32 %v292, %v395
      %v397 = vpop.f32.mrf.mxu0
      %v398 = vadd.f32 %v292, %v397
      %399 = vdwg.mxu0
      %v400 = vmax.f32 %v362, %v364
      %401 = vmax.xlane.f32.xlu0 %v400
      %v402 = vpop.xlane.xlu0 %401
      %v403 = vmax.f32 %v366, %v368
      %404 = vmax.xlane.f32.xlu0 %v403
      %v405 = vpop.xlane.xlu0 %404
      %v406 = vmax.f32 %v372, %v374
      %407 = vmax.xlane.f32.xlu0 %v406
      %v408 = vpop.xlane.xlu0 %407
      %v409 = vmax.f32 %v376, %v378
      %410 = vmax.xlane.f32.xlu0 %v409
      %v411 = vpop.xlane.xlu0 %410
      %v412 = vmax.f32 %v382, %v384
      %413 = vmax.xlane.f32.xlu0 %v412
      %v414 = vpop.xlane.xlu0 %413
      %v415 = vmax.f32 %v386, %v388
      %416 = vmax.xlane.f32.xlu0 %v415
      %v417 = vpop.xlane.xlu0 %416
      %v418 = vmax.f32 %v392, %v394
      %419 = vmax.xlane.f32.xlu0 %v418
      %v420 = vpop.xlane.xlu0 %419
      %v421 = vmax.f32 %v396, %v398
      %422 = vmax.xlane.f32.xlu0 %v421
      %v423 = vpop.xlane.xlu0 %422
      %v424 = vsub.f32 %v362, %v402
      %v425 = vsub.f32 %v364, %v402
      %v426 = vsub.f32 %v366, %v405
      %v427 = vsub.f32 %v368, %v405
      %v428 = vsub.f32 %v372, %v408
      %v429 = vsub.f32 %v374, %v408
      %v430 = vsub.f32 %v376, %v411
      %v431 = vsub.f32 %v378, %v411
      %v432 = vsub.f32 %v382, %v414
      %v433 = vsub.f32 %v384, %v414
      %v434 = vsub.f32 %v386, %v417
      %v435 = vsub.f32 %v388, %v417
      %v436 = vsub.f32 %v392, %v420
      %v437 = vsub.f32 %v394, %v420
      %v438 = vsub.f32 %v396, %v423
      %v439 = vsub.f32 %v398, %v423
      %v440 = vmul.f32 %v424, 1.442695
      %v441 = vpow.pop %v440
      %v442 = vmul.f32 %v425, 1.442695
      %v443 = vpow.pop %v442
      %v444 = vmul.f32 %v426, 1.442695
      %v445 = vpow.pop %v444
      %v446 = vmul.f32 %v427, 1.442695
      %v447 = vpow.pop %v446
      %v448 = vmul.f32 %v428, 1.442695
      %v449 = vpow.pop %v448
      %v450 = vmul.f32 %v429, 1.442695
      %v451 = vpow.pop %v450
      %v452 = vmul.f32 %v430, 1.442695
      %v453 = vpow.pop %v452
      %v454 = vmul.f32 %v431, 1.442695
      %v455 = vpow.pop %v454
      %v456 = vmul.f32 %v432, 1.442695
      %v457 = vpow.pop %v456
      %v458 = vmul.f32 %v433, 1.442695
      %v459 = vpow.pop %v458
      %v460 = vmul.f32 %v434, 1.442695
      %v461 = vpow.pop %v460
      %v462 = vmul.f32 %v435, 1.442695
      %v463 = vpow.pop %v462
      %v464 = vmul.f32 %v436, 1.442695
      %v465 = vpow.pop %v464
      %v466 = vmul.f32 %v437, 1.442695
      %v467 = vpow.pop %v466
      %v468 = vmul.f32 %v438, 1.442695
      %v469 = vpow.pop %v468
      %v470 = vmul.f32 %v439, 1.442695
      %v471 = vpow.pop %v470
      %v472 = vadd.f32 %v441, %v443
      %473 = vadd.xlane.f32.xlu0 %v472
      %v474 = vpop.xlane.xlu0 %473
      %v475 = vadd.f32 %v445, %v447
      %476 = vadd.xlane.f32.xlu0 %v475
      %v477 = vpop.xlane.xlu0 %476
      %v478 = vadd.f32 %v449, %v451
      %479 = vadd.xlane.f32.xlu0 %v478
      %v480 = vpop.xlane.xlu0 %479
      %v481 = vadd.f32 %v453, %v455
      %482 = vadd.xlane.f32.xlu0 %v481
      %v483 = vpop.xlane.xlu0 %482
      %v484 = vadd.f32 %v457, %v459
      %485 = vadd.xlane.f32.xlu0 %v484
      %v486 = vpop.xlane.xlu0 %485
      %v487 = vadd.f32 %v461, %v463
      %488 = vadd.xlane.f32.xlu0 %v487
      %v489 = vpop.xlane.xlu0 %488
      %v490 = vadd.f32 %v465, %v467
      %491 = vadd.xlane.f32.xlu0 %v490
      %v492 = vpop.xlane.xlu0 %491
      %v493 = vadd.f32 %v469, %v471
      %494 = vadd.xlane.f32.xlu0 %v493
      %v495 = vpop.xlane.xlu0 %494
      %v496 = vrcp.pop %v474
      %v497 = vrcp.pop %v477
      %v498 = vrcp.pop %v480
      %v499 = vrcp.pop %v483
      %v500 = vrcp.pop %v486
      %v501 = vrcp.pop %v489
      %v502 = vrcp.pop %v492
      %v503 = vrcp.pop %v495
      %v504 = vmul.f32 %v441, %v496
      %v505 = vmul.f32 %v443, %v496
      %v506 = vmul.f32 %v445, %v497
      %v507 = vmul.f32 %v447, %v497
      %v508 = vmul.f32 %v449, %v498
      %v509 = vmul.f32 %v451, %v498
      %v510 = vmul.f32 %v453, %v499
      %v511 = vmul.f32 %v455, %v499
      %v512 = vmul.f32 %v457, %v500
      %v513 = vmul.f32 %v459, %v500
      %v514 = vmul.f32 %v461, %v501
      %v515 = vmul.f32 %v463, %v501
      %v516 = vmul.f32 %v465, %v502
      %v517 = vmul.f32 %v467, %v502
      %v518 = vmul.f32 %v469, %v503
      %v519 = vmul.f32 %v471, %v503
      %v520 = vpack.c.bf16 %v506, %v504
      %v521 = vpack.c.bf16 %v507, %v505
      %v522 = vpack.c.bf16 %v510, %v508
      %v523 = vpack.c.bf16 %v511, %v509
      %v524 = vpack.c.bf16 %v514, %v512
      %v525 = vpack.c.bf16 %v515, %v513
      %v526 = vpack.c.bf16 %v518, %v516
      %v527 = vpack.c.bf16 %v519, %v517
      %v528 = vld [vmem:[%s3] sm:$0xf]
      %v529 = vld [vmem:[%s3 + $0x4] sm:$0xf]
      %v530 = vld [vmem:[%s3 + $0x8] sm:$0xf]
      %v531 = vld [vmem:[%s3 + $0xc] sm:$0xf]
      %v532 = vld [vmem:[%s3 + $0x10] sm:$0xf]
      %v533 = vld [vmem:[%s3 + $0x14] sm:$0xf]
      %v534 = vld [vmem:[%s3 + $0x18] sm:$0xf]
      %v535 = vld [vmem:[%s3 + $0x1c] sm:$0xf]
      %v544 = vunpack.c.l.b16 %v528
      %v545 = vunpack.c.l.b16 %v529
      %v546 = vunpack.c.l.b16 %v530
      %v547 = vunpack.c.l.b16 %v531
      %v548 = vunpack.c.l.b16 %v532
      %v549 = vunpack.c.l.b16 %v533
      %v550 = vunpack.c.l.b16 %v534
      %v551 = vunpack.c.l.b16 %v535
      %v552 = vpack.c.b16 %v545, %v544
      %v553 = vpack.c.b16 %v547, %v546
      %v554 = vpack.c.b16 %v549, %v548
      %v555 = vpack.c.b16 %v551, %v550
      %vm556 = vcmask 523264
      %v558 = vsel %vm556, %v552, 0
      %v561 = vsel %vm556, %v553, 0
      %v564 = vsel %vm556, %v554, 0
      %v567 = vsel %vm556, %v555, 0
      %569 = vmatprep.subr.bf16.mxu0 0
      %570 = vmatpush1.bf16.msra.mxu0 0
      %571 = vmatprep.subr.bf16.mxu0 0
      %572 = vmatpush1.bf16.msra.mxu0 0
      %573 = vmatprep.subr.bf16.mxu0 0
      %574 = vmatpush1.bf16.msra.mxu0 0
      %575 = vmatprep.subr.bf16.mxu0 0
      %576 = vmatpush1.bf16.msra.mxu0 0
      %577 = vmatprep.subr.bf16.mxu0 %v527
      %578 = vmatpush1.bf16.msra.mxu0 %v526
      %579 = vmatprep.subr.bf16.mxu0 %v525
      %580 = vmatpush1.bf16.msra.mxu0 %v524
      %581 = vmatprep.subr.bf16.mxu0 %v523
      %582 = vmatpush1.bf16.msra.mxu0 %v522
      %583 = vmatprep.subr.bf16.mxu0 %v521
      %584 = vmatpush1.bf16.msra.mxu0 %v520
      %585 = vmatprep.subr.bf16.mxu0 0
      %586 = vmatpush2.bf16.msra.mxu0 0
      %587 = vmatprep.subr.bf16.mxu0 0
      %588 = vmatpush2.bf16.msra.mxu0 0
      %589 = vmatprep.subr.bf16.mxu0 0
      %590 = vmatpush2.bf16.msra.mxu0 0
      %591 = vmatprep.subr.bf16.mxu0 0
      %592 = vmatpush2.bf16.msra.mxu0 0
      %593 = vmatprep.subr.bf16.mxu0 0
      %594 = vmatpush2.bf16.msra.mxu0 0
      %595 = vmatprep.subr.bf16.mxu0 0
      %596 = vmatpush2.bf16.msra.mxu0 0
      %597 = vmatprep.subr.bf16.mxu0 0
      %598 = vmatpush2.bf16.msra.mxu0 0
      %599 = vmatprep.subr.bf16.mxu0 0
      %600 = vmatpush2.bf16.msra.mxu0 0
      %601 = vmatprep.mubr.bf16.mxu0 0
      %602 = vmatmul.mubr.bf16.gmra.mxu0 %v558
      %v603 = vpop.f32.mrf.mxu0
      %v604 = vadd.f32 0.0, %v603
      %v605 = vpop.f32.mrf.mxu0
      %v606 = vadd.f32 0.0, %v605
      %v607 = vpop.f32.mrf.mxu0
      %v608 = vadd.f32 0.0, %v607
      %v609 = vpop.f32.mrf.mxu0
      %v610 = vadd.f32 0.0, %v609
      %611 = vmatprep.mubr.bf16.mxu0 0
      %612 = vmatmul.mubr.bf16.gmra.mxu0 %v561
      %v613 = vpop.f32.mrf.mxu0
      %v614 = vadd.f32 0.0, %v613
      %v615 = vpop.f32.mrf.mxu0
      %v616 = vadd.f32 0.0, %v615
      %v617 = vpop.f32.mrf.mxu0
      %v618 = vadd.f32 0.0, %v617
      %v619 = vpop.f32.mrf.mxu0
      %v620 = vadd.f32 0.0, %v619
      %621 = vmatprep.mubr.bf16.mxu0 0
      %622 = vmatmul.mubr.bf16.gmra.mxu0 %v564
      %v623 = vpop.f32.mrf.mxu0
      %v624 = vadd.f32 0.0, %v623
      %v625 = vpop.f32.mrf.mxu0
      %v626 = vadd.f32 0.0, %v625
      %v627 = vpop.f32.mrf.mxu0
      %v628 = vadd.f32 0.0, %v627
      %v629 = vpop.f32.mrf.mxu0
      %v630 = vadd.f32 0.0, %v629
      %631 = vmatprep.mubr.bf16.mxu0 0
      %632 = vmatmul.mubr.bf16.gmra.mxu0 %v567
      %v633 = vpop.f32.mrf.mxu0
      %v634 = vadd.f32 0.0, %v633
      %v635 = vpop.f32.mrf.mxu0
      %v636 = vadd.f32 0.0, %v635
      %v637 = vpop.f32.mrf.mxu0
      %v638 = vadd.f32 0.0, %v637
      %v639 = vpop.f32.mrf.mxu0
      %v640 = vadd.f32 0.0, %v639
      %641 = vdwg.mxu0
      %v642 = vmax.f32 %v604, 0.0001
      %v643 = vmax.f32 %v606, 0.0001
      %v644 = vmax.f32 %v608, 0.0001
      %v645 = vmax.f32 %v610, 0.0001
      %v646 = vmax.f32 %v614, 0.0001
      %v647 = vmax.f32 %v616, 0.0001
      %v648 = vmax.f32 %v618, 0.0001
      %v649 = vmax.f32 %v620, 0.0001
      %v650 = vmax.f32 %v624, 0.0001
      %v651 = vmax.f32 %v626, 0.0001
      %v652 = vmax.f32 %v628, 0.0001
      %v653 = vmax.f32 %v630, 0.0001
      %v654 = vmax.f32 %v634, 0.0001
      %v655 = vmax.f32 %v636, 0.0001
      %v656 = vmax.f32 %v638, 0.0001
      %v657 = vmax.f32 %v640, 0.0001
      %v658 = vrcp.pop %v642
      %v659 = vrcp.pop %v643
      %v660 = vrcp.pop %v644
      %v661 = vrcp.pop %v645
      %v662 = vrcp.pop %v646
      %v663 = vrcp.pop %v647
      %v664 = vrcp.pop %v648
      %v665 = vrcp.pop %v649
      %v666 = vrcp.pop %v650
      %v667 = vrcp.pop %v651
      %v668 = vrcp.pop %v652
      %v669 = vrcp.pop %v653
      %v670 = vrcp.pop %v654
      %v671 = vrcp.pop %v655
      %v672 = vrcp.pop %v656
      %v673 = vrcp.pop %v657
      %v674 = vpack.c.bf16 %v660, %v658
      %v675 = vpack.c.bf16 %v661, %v659
      %v676 = vpack.c.bf16 %v664, %v662
      %v677 = vpack.c.bf16 %v665, %v663
      %v678 = vpack.c.bf16 %v668, %v666
      %v679 = vpack.c.bf16 %v669, %v667
      %v680 = vpack.c.bf16 %v672, %v670
      %v681 = vpack.c.bf16 %v673, %v671
      %v682 = vmul.bf16 %v520, %v674
      %v683 = vmul.bf16 %v521, %v675
      %v684 = vmul.bf16 %v522, %v676
      %v685 = vmul.bf16 %v523, %v677
      %v686 = vmul.bf16 %v524, %v678
      %v687 = vmul.bf16 %v525, %v679
      %v688 = vmul.bf16 %v526, %v680
      %v689 = vmul.bf16 %v527, %v681
      %v690 = vld [vmem:[%s4] sm:$0xf]
      %v691 = vld [vmem:[%s4 + $0x4] sm:$0xf]
      %v692 = vld [vmem:[%s4 + $0x8] sm:$0xf]
      %v693 = vld [vmem:[%s4 + $0xc] sm:$0xf]
      %v698 = vunpack.c.l.b16 %v690
      %v699 = vunpack.c.l.b16 %v691
      %v700 = vunpack.c.l.b16 %v692
      %v701 = vunpack.c.l.b16 %v693
      %v702 = vpack.c.b16 %v699, %v698
      %v703 = vpack.c.b16 %v701, %v700
      %v705 = vsel %vm556, %v702, 0
      %v708 = vsel %vm556, %v703, 0
      %710 = vmatprep.subr.bf16.mxu0 0
      %711 = vmatpush1.bf16.msra.mxu0 0
      %712 = vmatprep.subr.bf16.mxu0 0
      %713 = vmatpush1.bf16.msra.mxu0 0
      %714 = vmatprep.subr.bf16.mxu0 0
      %715 = vmatpush1.bf16.msra.mxu0 0
      %716 = vmatprep.subr.bf16.mxu0 0
      %717 = vmatpush1.bf16.msra.mxu0 0
      %718 = vmatprep.subr.bf16.mxu0 %v689
      %719 = vmatpush1.bf16.msra.mxu0 %v688
      %720 = vmatprep.subr.bf16.mxu0 %v687
      %721 = vmatpush1.bf16.msra.mxu0 %v686
      %722 = vmatprep.subr.bf16.mxu0 %v685
      %723 = vmatpush1.bf16.msra.mxu0 %v684
      %724 = vmatprep.subr.bf16.mxu0 %v683
      %725 = vmatpush1.bf16.msra.mxu0 %v682
      %726 = vmatprep.subr.bf16.mxu0 0
      %727 = vmatpush2.bf16.msra.mxu0 0
      %728 = vmatprep.subr.bf16.mxu0 0
      %729 = vmatpush2.bf16.msra.mxu0 0
      %730 = vmatprep.subr.bf16.mxu0 0
      %731 = vmatpush2.bf16.msra.mxu0 0
      %732 = vmatprep.subr.bf16.mxu0 0
      %733 = vmatpush2.bf16.msra.mxu0 0
      %734 = vmatprep.subr.bf16.mxu0 0
      %735 = vmatpush2.bf16.msra.mxu0 0
      %736 = vmatprep.subr.bf16.mxu0 0
      %737 = vmatpush2.bf16.msra.mxu0 0
      %738 = vmatprep.subr.bf16.mxu0 0
      %739 = vmatpush2.bf16.msra.mxu0 0
      %740 = vmatprep.subr.bf16.mxu0 0
      %741 = vmatpush2.bf16.msra.mxu0 0
      %742 = vmatprep.mubr.bf16.mxu0 0
      %743 = vmatmul.mubr.bf16.gmra.mxu0 %v705
      %v744 = vpop.f32.mrf.mxu0
      %v745 = vadd.f32 0.0, %v744
      %v746 = vpop.f32.mrf.mxu0
      %v747 = vadd.f32 0.0, %v746
      %v748 = vpop.f32.mrf.mxu0
      %v749 = vadd.f32 0.0, %v748
      %v750 = vpop.f32.mrf.mxu0
      %v751 = vadd.f32 0.0, %v750
      %752 = vmatprep.mubr.bf16.mxu0 0
      %753 = vmatmul.mubr.bf16.gmra.mxu0 %v708
      %v754 = vpop.f32.mrf.mxu0
      %v755 = vadd.f32 0.0, %v754
      %v756 = vpop.f32.mrf.mxu0
      %v757 = vadd.f32 0.0, %v756
      %v758 = vpop.f32.mrf.mxu0
      %v759 = vadd.f32 0.0, %v758
      %v760 = vpop.f32.mrf.mxu0
      %v761 = vadd.f32 0.0, %v760
      %762 = vdwg.mxu0
      %763 = vst [vmem:[%s224] sm:$0xff] %v745
      %764 = vst [vmem:[%s224 + $0x8] sm:$0xff] %v747
      %765 = vst [vmem:[%s224 + $0x10] sm:$0xff] %v749
      %766 = vst [vmem:[%s224 + $0x18] sm:$0xff] %v751
      %767 = vst [vmem:[%s224 + $0x20] sm:$0xff] %v755
      %768 = vst [vmem:[%s224 + $0x28] sm:$0xff] %v757
      %769 = vst [vmem:[%s224 + $0x30] sm:$0xff] %v759
      %770 = vst [vmem:[%s224 + $0x38] sm:$0xff] %v761
      %p771 = scmp.lt.s32.totalorder %s16, 1
      %s772 = scalar_select %p771, %s16, 1
      %s773 = smul.addr %s772, 8
      %s774 = smul.addr %s773, 8
      %s775 = scalar_lea.vmem %s5, %s774
      // Predicated region
      $region41: #{external_attention_forward.1} parent=39 // pred_check
        %p776 = pneg %p144
      $region42: #{external_attention_forward.1} parent=39 // pred_check_branch
        %778 = sbr.rel (%p776) target = $region44
      $region43: #{external_attention_forward.1} parent=39 // pred_region
        _
      $region44: #{external_attention_forward.1} parent=39 // pred_fallthru
        _
    $region40: #{external_attention_forward.1} parent=5 // pred_fallthru
      _
    %p779 = scmp.le.s32.totalorder 2, %s11
    // Predicated region
    $region45: #{external_attention_forward.1} parent=5 // pred_check
      %p780 = pneg %p779
    $region46: #{external_attention_forward.1} parent=5 // pred_check_branch
      %782 = sbr.rel (%p780) target = $region48
    $region47: #{external_attention_forward.1} parent=5 // pred_region
      %s783 = ssub.s32 %s11, 2
      // Predicated region
      $region49: #{external_attention_forward.1} parent=47 // pred_check
        %p784 = pneg %p150
      $region50: #{external_attention_forward.1} parent=47 // pred_check_branch
        %786 = sbr.rel (%p784) target = $region52
      $region51: #{external_attention_forward.1} parent=47 // pred_region
        %p787 = scmp.lt.s32.totalorder %s17, 1
        %s788 = scalar_select %p787, %s17, 1
        %s789 = smul.addr %s788, 8
        %s790 = smul.addr %s789, 8
        %s791 = scalar_lea.vmem %s5, %s790
      $region52: #{external_attention_forward.1} parent=47 // pred_fallthru
        _
    $region48: #{external_attention_forward.1} parent=5 // pred_fallthru
      _
  $region6: #{external_attention_forward.1} parent=0 // loop_footer
    %s15 = sadd.s32 1, %s11
  $region7: #{external_attention_forward.1} parent=0 // loop_footer_branch
    %10 = sbr.rel target = $region3
  $region8: #{external_attention_forward.1} parent=0 // loop_exit
    _

</llo_original>
